<compile_context>
chip_gen: v5e
topology: v5e:2x2
jax: 0.10.0
libtpu: 0.0.40
codegen_flags: <defaults>
</compile_context>

<pallas_src>
import jax
import jax.numpy as jnp
from jax.experimental import pallas as pl
from jax.experimental.pallas import tpu as pltpu


_SMALL_PARAM_BYTES = 1 << 20   # below this, skip pallas_call entirely
_DEFAULT_DMA_CHUNKS = 8        # outstanding DMAs for the large-copy path


# ----------------------------------------------------------------------------
# Chunked HBM -> HBM identity copy (materializing path for large parameters).
# ----------------------------------------------------------------------------
def _chunk_plan(shape, max_chunks):
    """Static (offset, size) plan along the leading axis, or None for one DMA."""
    if len(shape) == 0 or shape[0] <= 1 or max_chunks <= 1:
        return None
    rows = int(shape[0])
    n = min(int(max_chunks), rows)
    chunk = -(-rows // n)  # ceil divide
    plan = []
    off = 0
    while off < rows:
        size = min(chunk, rows - off)
        plan.append((off, size))
        off += size
    return plan


def _make_chunked_copy_kernel(plan):
    """Kernel: start all chunk DMAs, then wait on all of them."""

    def kernel(value_hbm_ref, out_hbm_ref, copy_sems):
        copies = []
        if plan is None:
            copies.append(
                pltpu.make_async_copy(value_hbm_ref, out_hbm_ref, copy_sems.at[0])
            )
        else:
            for c, (off, size) in enumerate(plan):
                copies.append(
                    pltpu.make_async_copy(
                        value_hbm_ref.at[pl.ds(off, size)],
                        out_hbm_ref.at[pl.ds(off, size)],
                        copy_sems.at[c],
                    )
                )
        # start-all then wait-all: hides descriptor issue latency and keeps
        # multiple DMAs in flight to saturate HBM.
        for cp in copies:
            cp.start()
        for cp in copies:
            cp.wait()

    return kernel


def _pallas_dma_copy(value: jax.Array, *, max_chunks: int = _DEFAULT_DMA_CHUNKS):
    """Materialize `value` into a fresh buffer with chunked HBM->HBM DMAs."""
    plan = _chunk_plan(value.shape, max_chunks)
    num_chunks = 1 if plan is None else len(plan)
    nbytes = value.size * value.dtype.itemsize
    return pl.pallas_call(
        _make_chunked_copy_kernel(plan),
        out_shape=jax.ShapeDtypeStruct(value.shape, value.dtype),
        in_specs=[pl.BlockSpec(memory_space=pl.ANY)],   # raw HBM ref, no auto-DMA
        out_specs=pl.BlockSpec(memory_space=pl.ANY),    # raw HBM ref, we DMA into it
        scratch_shapes=[pltpu.SemaphoreType.DMA((num_chunks,))],
        cost_estimate=pl.CostEstimate(
            flops=0, transcendentals=0, bytes_accessed=2 * nbytes
        ),
    )(value)


# ----------------------------------------------------------------------------
# Zero-traffic kernel boundary: output aliases the input, body is a no-op.
# ----------------------------------------------------------------------------
def _aliased_noop_kernel(value_hbm_ref, out_hbm_ref):
    # Output buffer IS the input buffer (input_output_aliases={0: 0}), so there
    # is nothing to read or write: a kernel boundary with zero HBM traffic.
    del value_hbm_ref, out_hbm_ref


def wrapped_parameter_as_kernel_boundary(value: jax.Array) -> jax.Array:
    """Identity through a pallas_call with in/out aliasing (input is donated)."""
    return pl.pallas_call(
        _aliased_noop_kernel,
        out_shape=jax.ShapeDtypeStruct(value.shape, value.dtype),
        in_specs=[pl.BlockSpec(memory_space=pl.ANY)],
        out_specs=pl.BlockSpec(memory_space=pl.ANY),
        input_output_aliases={0: 0},
        cost_estimate=pl.CostEstimate(flops=0, transcendentals=0, bytes_accessed=0),
    )(value)


# ----------------------------------------------------------------------------
# Module wrapper.
# ----------------------------------------------------------------------------
def wrapped_parameter_materialize(
    value: jax.Array, *, max_chunks: int = _DEFAULT_DMA_CHUNKS
) -> jax.Array:
    nbytes = value.size * value.dtype.itemsize
    if nbytes < _SMALL_PARAM_BYTES:
        # KB-scale parameter: kernel dispatch + DMA setup dwarf the transfer.
        return jnp.copy(value)
    return _pallas_dma_copy(value, max_chunks=max_chunks)


class WrappedParameter:
    """JAX/Pallas analogue of the PyTorch WrappedParameter module."""

    def __init__(self, value: jax.Array) -> None:
        self.value = value  # "nn.Parameter"

    def __call__(self) -> jax.Array:
        # forward(): return self.value — the parameter itself, no copy, no kernel.
        return self.value

    def materialized(self, *, max_chunks: int = _DEFAULT_DMA_CHUNKS) -> jax.Array:
        # Fresh-buffer variant: XLA copy for small params, chunked DMA kernel
        # for large ones.
        return wrapped_parameter_materialize(self.value, max_chunks=max_chunks)


if __name__ == "__main__":
    key = jax.random.PRNGKey(0)
    k_small, k_big = jax.random.split(key)

    # Small learnable table the transfusion head would wrap (16x128 f32 = 8 KiB).
    param_small = jax.random.normal(k_small, (16, 128), dtype=jnp.float32)
    # Larger parameter (2048x128 f32 = 1 MiB) that crosses the size threshold
    # and exercises the chunked HBM->HBM DMA kernel path (8 chunks of 256 rows).
    param_big = jax.random.normal(k_big, (2048, 128), dtype=jnp.float32)

    small = WrappedParameter(param_small)
    big = WrappedParameter(param_big)

    # 1) Hot path: forward() returns the stored parameter itself (zero cost).
    out_direct = small()
    assert out_direct is param_small

    # 2) Small materialize: plain XLA copy, no pallas_call.
    out_small = jax.block_until_ready(small.materialized())
    assert out_small.shape == param_small.shape
    assert out_small.dtype == param_small.dtype
    assert bool(jnp.array_equal(out_small, param_small))

    # 3) Large materialize: chunked start-all/wait-all HBM->HBM DMA kernel.
    out_big = jax.block_until_ready(big.materialized())
    assert out_big.shape == param_big.shape
    assert out_big.dtype == param_big.dtype
    assert bool(jnp.array_equal(out_big, param_big))

    # 4) Also force the Pallas DMA kernel on the small parameter, independent of
    #    the size heuristic, to validate the kernel path at small shapes.
    out_small_kernel = jax.block_until_ready(_pallas_dma_copy(param_small, max_chunks=2))
    assert bool(jnp.array_equal(out_small_kernel, param_small))

    # 5) Zero-traffic kernel boundary via input/output aliasing.  Run on a
    #    throwaway copy: the aliased input buffer is donated to the output, so
    #    `boundary_in` must not be reused afterwards.
    boundary_in = jnp.copy(param_small)
    out_alias = jax.block_until_ready(wrapped_parameter_as_kernel_boundary(boundary_in))
    assert bool(jnp.array_equal(out_alias, param_small))

    print("KERNEL_OK")
</pallas_src>

<mosaic_0001>
module attributes {stable_mosaic.version = 11 : i64} {
  func.func @kernel(%arg0: memref<2048x128xf32, #tpu.memory_space<any>>, %arg1: memref<2048x128xf32, #tpu.memory_space<any>>, %arg2: memref<8x!tpu.dma_semaphore, #tpu.memory_space<semaphore_mem>>) attributes {dimension_semantics = [], scalar_prefetch = 0 : i64, scratch_operands = 1 : i64, tpu.core_type = #tpu.core_type<tc>} {
    %c0_i32 = arith.constant 0 : i32
    %c0_i32_0 = arith.constant 0 : i32
    %c0_i32_1 = arith.constant 0 : i32
    %0 = tpu.memref_slice %arg0[%c0_i32_0, %c0_i32_1] : memref<2048x128xf32, #tpu.memory_space<any>> -> memref<256x128xf32, #tpu.memory_space<any>>
    %c0_i32_2 = arith.constant 0 : i32
    %c0_i32_3 = arith.constant 0 : i32
    %1 = tpu.memref_slice %arg1[%c0_i32_2, %c0_i32_3] : memref<2048x128xf32, #tpu.memory_space<any>> -> memref<256x128xf32, #tpu.memory_space<any>>
    %2 = tpu.memref_slice %arg2[%c0_i32] : memref<8x!tpu.dma_semaphore, #tpu.memory_space<semaphore_mem>> -> memref<1x!tpu.dma_semaphore, #tpu.memory_space<semaphore_mem>>
    %3 = tpu.memref_squeeze %2 : memref<1x!tpu.dma_semaphore, #tpu.memory_space<semaphore_mem>> -> memref<!tpu.dma_semaphore, #tpu.memory_space<semaphore_mem>>
    tpu.enqueue_dma source(%0 : memref<256x128xf32, #tpu.memory_space<any>>) target(%1 : memref<256x128xf32, #tpu.memory_space<any>>) target_semaphore(%3 : memref<!tpu.dma_semaphore, #tpu.memory_space<semaphore_mem>>)
    %c1_i32 = arith.constant 1 : i32
    %c256_i32 = arith.constant 256 : i32
    %c0_i32_4 = arith.constant 0 : i32
    %4 = tpu.memref_slice %arg0[%c256_i32, %c0_i32_4] : memref<2048x128xf32, #tpu.memory_space<any>> -> memref<256x128xf32, #tpu.memory_space<any>>
    %c256_i32_5 = arith.constant 256 : i32
    %c0_i32_6 = arith.constant 0 : i32
    %5 = tpu.memref_slice %arg1[%c256_i32_5, %c0_i32_6] : memref<2048x128xf32, #tpu.memory_space<any>> -> memref<256x128xf32, #tpu.memory_space<any>>
    %6 = tpu.memref_slice %arg2[%c1_i32] : memref<8x!tpu.dma_semaphore, #tpu.memory_space<semaphore_mem>> -> memref<1x!tpu.dma_semaphore, #tpu.memory_space<semaphore_mem>>
    %7 = tpu.memref_squeeze %6 : memref<1x!tpu.dma_semaphore, #tpu.memory_space<semaphore_mem>> -> memref<!tpu.dma_semaphore, #tpu.memory_space<semaphore_mem>>
    tpu.enqueue_dma source(%4 : memref<256x128xf32, #tpu.memory_space<any>>) target(%5 : memref<256x128xf32, #tpu.memory_space<any>>) target_semaphore(%7 : memref<!tpu.dma_semaphore, #tpu.memory_space<semaphore_mem>>)
    %c2_i32 = arith.constant 2 : i32
    %c512_i32 = arith.constant 512 : i32
    %c0_i32_7 = arith.constant 0 : i32
    %8 = tpu.memref_slice %arg0[%c512_i32, %c0_i32_7] : memref<2048x128xf32, #tpu.memory_space<any>> -> memref<256x128xf32, #tpu.memory_space<any>>
    %c512_i32_8 = arith.constant 512 : i32
    %c0_i32_9 = arith.constant 0 : i32
    %9 = tpu.memref_slice %arg1[%c512_i32_8, %c0_i32_9] : memref<2048x128xf32, #tpu.memory_space<any>> -> memref<256x128xf32, #tpu.memory_space<any>>
    %10 = tpu.memref_slice %arg2[%c2_i32] : memref<8x!tpu.dma_semaphore, #tpu.memory_space<semaphore_mem>> -> memref<1x!tpu.dma_semaphore, #tpu.memory_space<semaphore_mem>>
    %11 = tpu.memref_squeeze %10 : memref<1x!tpu.dma_semaphore, #tpu.memory_space<semaphore_mem>> -> memref<!tpu.dma_semaphore, #tpu.memory_space<semaphore_mem>>
    tpu.enqueue_dma source(%8 : memref<256x128xf32, #tpu.memory_space<any>>) target(%9 : memref<256x128xf32, #tpu.memory_space<any>>) target_semaphore(%11 : memref<!tpu.dma_semaphore, #tpu.memory_space<semaphore_mem>>)
    %c3_i32 = arith.constant 3 : i32
    %c768_i32 = arith.constant 768 : i32
    %c0_i32_10 = arith.constant 0 : i32
    %12 = tpu.memref_slice %arg0[%c768_i32, %c0_i32_10] : memref<2048x128xf32, #tpu.memory_space<any>> -> memref<256x128xf32, #tpu.memory_space<any>>
    %c768_i32_11 = arith.constant 768 : i32
    %c0_i32_12 = arith.constant 0 : i32
    %13 = tpu.memref_slice %arg1[%c768_i32_11, %c0_i32_12] : memref<2048x128xf32, #tpu.memory_space<any>> -> memref<256x128xf32, #tpu.memory_space<any>>
    %14 = tpu.memref_slice %arg2[%c3_i32] : memref<8x!tpu.dma_semaphore, #tpu.memory_space<semaphore_mem>> -> memref<1x!tpu.dma_semaphore, #tpu.memory_space<semaphore_mem>>
    %15 = tpu.memref_squeeze %14 : memref<1x!tpu.dma_semaphore, #tpu.memory_space<semaphore_mem>> -> memref<!tpu.dma_semaphore, #tpu.memory_space<semaphore_mem>>
    tpu.enqueue_dma source(%12 : memref<256x128xf32, #tpu.memory_space<any>>) target(%13 : memref<256x128xf32, #tpu.memory_space<any>>) target_semaphore(%15 : memref<!tpu.dma_semaphore, #tpu.memory_space<semaphore_mem>>)
    %c4_i32 = arith.constant 4 : i32
    %c1024_i32 = arith.constant 1024 : i32
    %c0_i32_13 = arith.constant 0 : i32
    %16 = tpu.memref_slice %arg0[%c1024_i32, %c0_i32_13] : memref<2048x128xf32, #tpu.memory_space<any>> -> memref<256x128xf32, #tpu.memory_space<any>>
    %c1024_i32_14 = arith.constant 1024 : i32
    %c0_i32_15 = arith.constant 0 : i32
    %17 = tpu.memref_slice %arg1[%c1024_i32_14, %c0_i32_15] : memref<2048x128xf32, #tpu.memory_space<any>> -> memref<256x128xf32, #tpu.memory_space<any>>
    %18 = tpu.memref_slice %arg2[%c4_i32] : memref<8x!tpu.dma_semaphore, #tpu.memory_space<semaphore_mem>> -> memref<1x!tpu.dma_semaphore, #tpu.memory_space<semaphore_mem>>
    %19 = tpu.memref_squeeze %18 : memref<1x!tpu.dma_semaphore, #tpu.memory_space<semaphore_mem>> -> memref<!tpu.dma_semaphore, #tpu.memory_space<semaphore_mem>>
    tpu.enqueue_dma source(%16 : memref<256x128xf32, #tpu.memory_space<any>>) target(%17 : memref<256x128xf32, #tpu.memory_space<any>>) target_semaphore(%19 : memref<!tpu.dma_semaphore, #tpu.memory_space<semaphore_mem>>)
    %c5_i32 = arith.constant 5 : i32
    %c1280_i32 = arith.constant 1280 : i32
    %c0_i32_16 = arith.constant 0 : i32
    %20 = tpu.memref_slice %arg0[%c1280_i32, %c0_i32_16] : memref<2048x128xf32, #tpu.memory_space<any>> -> memref<256x128xf32, #tpu.memory_space<any>>
    %c1280_i32_17 = arith.constant 1280 : i32
    %c0_i32_18 = arith.constant 0 : i32
    %21 = tpu.memref_slice %arg1[%c1280_i32_17, %c0_i32_18] : memref<2048x128xf32, #tpu.memory_space<any>> -> memref<256x128xf32, #tpu.memory_space<any>>
    %22 = tpu.memref_slice %arg2[%c5_i32] : memref<8x!tpu.dma_semaphore, #tpu.memory_space<semaphore_mem>> -> memref<1x!tpu.dma_semaphore, #tpu.memory_space<semaphore_mem>>
    %23 = tpu.memref_squeeze %22 : memref<1x!tpu.dma_semaphore, #tpu.memory_space<semaphore_mem>> -> memref<!tpu.dma_semaphore, #tpu.memory_space<semaphore_mem>>
    tpu.enqueue_dma source(%20 : memref<256x128xf32, #tpu.memory_space<any>>) target(%21 : memref<256x128xf32, #tpu.memory_space<any>>) target_semaphore(%23 : memref<!tpu.dma_semaphore, #tpu.memory_space<semaphore_mem>>)
    %c6_i32 = arith.constant 6 : i32
    %c1536_i32 = arith.constant 1536 : i32
    %c0_i32_19 = arith.constant 0 : i32
    %24 = tpu.memref_slice %arg0[%c1536_i32, %c0_i32_19] : memref<2048x128xf32, #tpu.memory_space<any>> -> memref<256x128xf32, #tpu.memory_space<any>>
    %c1536_i32_20 = arith.constant 1536 : i32
    %c0_i32_21 = arith.constant 0 : i32
    %25 = tpu.memref_slice %arg1[%c1536_i32_20, %c0_i32_21] : memref<2048x128xf32, #tpu.memory_space<any>> -> memref<256x128xf32, #tpu.memory_space<any>>
    %26 = tpu.memref_slice %arg2[%c6_i32] : memref<8x!tpu.dma_semaphore, #tpu.memory_space<semaphore_mem>> -> memref<1x!tpu.dma_semaphore, #tpu.memory_space<semaphore_mem>>
    %27 = tpu.memref_squeeze %26 : memref<1x!tpu.dma_semaphore, #tpu.memory_space<semaphore_mem>> -> memref<!tpu.dma_semaphore, #tpu.memory_space<semaphore_mem>>
    tpu.enqueue_dma source(%24 : memref<256x128xf32, #tpu.memory_space<any>>) target(%25 : memref<256x128xf32, #tpu.memory_space<any>>) target_semaphore(%27 : memref<!tpu.dma_semaphore, #tpu.memory_space<semaphore_mem>>)
    %c7_i32 = arith.constant 7 : i32
    %c1792_i32 = arith.constant 1792 : i32
    %c0_i32_22 = arith.constant 0 : i32
    %28 = tpu.memref_slice %arg0[%c1792_i32, %c0_i32_22] : memref<2048x128xf32, #tpu.memory_space<any>> -> memref<256x128xf32, #tpu.memory_space<any>>
    %c1792_i32_23 = arith.constant 1792 : i32
    %c0_i32_24 = arith.constant 0 : i32
    %29 = tpu.memref_slice %arg1[%c1792_i32_23, %c0_i32_24] : memref<2048x128xf32, #tpu.memory_space<any>> -> memref<256x128xf32, #tpu.memory_space<any>>
    %30 = tpu.memref_slice %arg2[%c7_i32] : memref<8x!tpu.dma_semaphore, #tpu.memory_space<semaphore_mem>> -> memref<1x!tpu.dma_semaphore, #tpu.memory_space<semaphore_mem>>
    %31 = tpu.memref_squeeze %30 : memref<1x!tpu.dma_semaphore, #tpu.memory_space<semaphore_mem>> -> memref<!tpu.dma_semaphore, #tpu.memory_space<semaphore_mem>>
    tpu.enqueue_dma source(%28 : memref<256x128xf32, #tpu.memory_space<any>>) target(%29 : memref<256x128xf32, #tpu.memory_space<any>>) target_semaphore(%31 : memref<!tpu.dma_semaphore, #tpu.memory_space<semaphore_mem>>)
    %c0_i32_25 = arith.constant 0 : i32
    %c0_i32_26 = arith.constant 0 : i32
    %c0_i32_27 = arith.constant 0 : i32
    %32 = tpu.memref_slice %arg0[%c0_i32_26, %c0_i32_27] : memref<2048x128xf32, #tpu.memory_space<any>> -> memref<256x128xf32, #tpu.memory_space<any>>
    %c0_i32_28 = arith.constant 0 : i32
    %c0_i32_29 = arith.constant 0 : i32
    %33 = tpu.memref_slice %arg1[%c0_i32_28, %c0_i32_29] : memref<2048x128xf32, #tpu.memory_space<any>> -> memref<256x128xf32, #tpu.memory_space<any>>
    %34 = tpu.memref_slice %arg2[%c0_i32_25] : memref<8x!tpu.dma_semaphore, #tpu.memory_space<semaphore_mem>> -> memref<1x!tpu.dma_semaphore, #tpu.memory_space<semaphore_mem>>
    %35 = tpu.memref_squeeze %34 : memref<1x!tpu.dma_semaphore, #tpu.memory_space<semaphore_mem>> -> memref<!tpu.dma_semaphore, #tpu.memory_space<semaphore_mem>>
    tpu.wait_dma2 semaphore(%35 : memref<!tpu.dma_semaphore, #tpu.memory_space<semaphore_mem>>) src(%32 : memref<256x128xf32, #tpu.memory_space<any>>) dst(%33 : memref<256x128xf32, #tpu.memory_space<any>>)
    %c1_i32_30 = arith.constant 1 : i32
    %c256_i32_31 = arith.constant 256 : i32
    %c0_i32_32 = arith.constant 0 : i32
    %36 = tpu.memref_slice %arg0[%c256_i32_31, %c0_i32_32] : memref<2048x128xf32, #tpu.memory_space<any>> -> memref<256x128xf32, #tpu.memory_space<any>>
    %c256_i32_33 = arith.constant 256 : i32
    %c0_i32_34 = arith.constant 0 : i32
    %37 = tpu.memref_slice %arg1[%c256_i32_33, %c0_i32_34] : memref<2048x128xf32, #tpu.memory_space<any>> -> memref<256x128xf32, #tpu.memory_space<any>>
    %38 = tpu.memref_slice %arg2[%c1_i32_30] : memref<8x!tpu.dma_semaphore, #tpu.memory_space<semaphore_mem>> -> memref<1x!tpu.dma_semaphore, #tpu.memory_space<semaphore_mem>>
    %39 = tpu.memref_squeeze %38 : memref<1x!tpu.dma_semaphore, #tpu.memory_space<semaphore_mem>> -> memref<!tpu.dma_semaphore, #tpu.memory_space<semaphore_mem>>
    tpu.wait_dma2 semaphore(%39 : memref<!tpu.dma_semaphore, #tpu.memory_space<semaphore_mem>>) src(%36 : memref<256x128xf32, #tpu.memory_space<any>>) dst(%37 : memref<256x128xf32, #tpu.memory_space<any>>)
    %c2_i32_35 = arith.constant 2 : i32
    %c512_i32_36 = arith.constant 512 : i32
    %c0_i32_37 = arith.constant 0 : i32
    %40 = tpu.memref_slice %arg0[%c512_i32_36, %c0_i32_37] : memref<2048x128xf32, #tpu.memory_space<any>> -> memref<256x128xf32, #tpu.memory_space<any>>
    %c512_i32_38 = arith.constant 512 : i32
    %c0_i32_39 = arith.constant 0 : i32
    %41 = tpu.memref_slice %arg1[%c512_i32_38, %c0_i32_39] : memref<2048x128xf32, #tpu.memory_space<any>> -> memref<256x128xf32, #tpu.memory_space<any>>
    %42 = tpu.memref_slice %arg2[%c2_i32_35] : memref<8x!tpu.dma_semaphore, #tpu.memory_space<semaphore_mem>> -> memref<1x!tpu.dma_semaphore, #tpu.memory_space<semaphore_mem>>
    %43 = tpu.memref_squeeze %42 : memref<1x!tpu.dma_semaphore, #tpu.memory_space<semaphore_mem>> -> memref<!tpu.dma_semaphore, #tpu.memory_space<semaphore_mem>>
    tpu.wait_dma2 semaphore(%43 : memref<!tpu.dma_semaphore, #tpu.memory_space<semaphore_mem>>) src(%40 : memref<256x128xf32, #tpu.memory_space<any>>) dst(%41 : memref<256x128xf32, #tpu.memory_space<any>>)
    %c3_i32_40 = arith.constant 3 : i32
    %c768_i32_41 = arith.constant 768 : i32
    %c0_i32_42 = arith.constant 0 : i32
    %44 = tpu.memref_slice %arg0[%c768_i32_41, %c0_i32_42] : memref<2048x128xf32, #tpu.memory_space<any>> -> memref<256x128xf32, #tpu.memory_space<any>>
    %c768_i32_43 = arith.constant 768 : i32
    %c0_i32_44 = arith.constant 0 : i32
    %45 = tpu.memref_slice %arg1[%c768_i32_43, %c0_i32_44] : memref<2048x128xf32, #tpu.memory_space<any>> -> memref<256x128xf32, #tpu.memory_space<any>>
    %46 = tpu.memref_slice %arg2[%c3_i32_40] : memref<8x!tpu.dma_semaphore, #tpu.memory_space<semaphore_mem>> -> memref<1x!tpu.dma_semaphore, #tpu.memory_space<semaphore_mem>>
    %47 = tpu.memref_squeeze %46 : memref<1x!tpu.dma_semaphore, #tpu.memory_space<semaphore_mem>> -> memref<!tpu.dma_semaphore, #tpu.memory_space<semaphore_mem>>
    tpu.wait_dma2 semaphore(%47 : memref<!tpu.dma_semaphore, #tpu.memory_space<semaphore_mem>>) src(%44 : memref<256x128xf32, #tpu.memory_space<any>>) dst(%45 : memref<256x128xf32, #tpu.memory_space<any>>)
    %c4_i32_45 = arith.constant 4 : i32
    %c1024_i32_46 = arith.constant 1024 : i32
    %c0_i32_47 = arith.constant 0 : i32
    %48 = tpu.memref_slice %arg0[%c1024_i32_46, %c0_i32_47] : memref<2048x128xf32, #tpu.memory_space<any>> -> memref<256x128xf32, #tpu.memory_space<any>>
    %c1024_i32_48 = arith.constant 1024 : i32
    %c0_i32_49 = arith.constant 0 : i32
    %49 = tpu.memref_slice %arg1[%c1024_i32_48, %c0_i32_49] : memref<2048x128xf32, #tpu.memory_space<any>> -> memref<256x128xf32, #tpu.memory_space<any>>
    %50 = tpu.memref_slice %arg2[%c4_i32_45] : memref<8x!tpu.dma_semaphore, #tpu.memory_space<semaphore_mem>> -> memref<1x!tpu.dma_semaphore, #tpu.memory_space<semaphore_mem>>
    %51 = tpu.memref_squeeze %50 : memref<1x!tpu.dma_semaphore, #tpu.memory_space<semaphore_mem>> -> memref<!tpu.dma_semaphore, #tpu.memory_space<semaphore_mem>>
    tpu.wait_dma2 semaphore(%51 : memref<!tpu.dma_semaphore, #tpu.memory_space<semaphore_mem>>) src(%48 : memref<256x128xf32, #tpu.memory_space<any>>) dst(%49 : memref<256x128xf32, #tpu.memory_space<any>>)
    %c5_i32_50 = arith.constant 5 : i32
    %c1280_i32_51 = arith.constant 1280 : i32
    %c0_i32_52 = arith.constant 0 : i32
    %52 = tpu.memref_slice %arg0[%c1280_i32_51, %c0_i32_52] : memref<2048x128xf32, #tpu.memory_space<any>> -> memref<256x128xf32, #tpu.memory_space<any>>
    %c1280_i32_53 = arith.constant 1280 : i32
    %c0_i32_54 = arith.constant 0 : i32
    %53 = tpu.memref_slice %arg1[%c1280_i32_53, %c0_i32_54] : memref<2048x128xf32, #tpu.memory_space<any>> -> memref<256x128xf32, #tpu.memory_space<any>>
    %54 = tpu.memref_slice %arg2[%c5_i32_50] : memref<8x!tpu.dma_semaphore, #tpu.memory_space<semaphore_mem>> -> memref<1x!tpu.dma_semaphore, #tpu.memory_space<semaphore_mem>>
    %55 = tpu.memref_squeeze %54 : memref<1x!tpu.dma_semaphore, #tpu.memory_space<semaphore_mem>> -> memref<!tpu.dma_semaphore, #tpu.memory_space<semaphore_mem>>
    tpu.wait_dma2 semaphore(%55 : memref<!tpu.dma_semaphore, #tpu.memory_space<semaphore_mem>>) src(%52 : memref<256x128xf32, #tpu.memory_space<any>>) dst(%53 : memref<256x128xf32, #tpu.memory_space<any>>)
    %c6_i32_55 = arith.constant 6 : i32
    %c1536_i32_56 = arith.constant 1536 : i32
    %c0_i32_57 = arith.constant 0 : i32
    %56 = tpu.memref_slice %arg0[%c1536_i32_56, %c0_i32_57] : memref<2048x128xf32, #tpu.memory_space<any>> -> memref<256x128xf32, #tpu.memory_space<any>>
    %c1536_i32_58 = arith.constant 1536 : i32
    %c0_i32_59 = arith.constant 0 : i32
    %57 = tpu.memref_slice %arg1[%c1536_i32_58, %c0_i32_59] : memref<2048x128xf32, #tpu.memory_space<any>> -> memref<256x128xf32, #tpu.memory_space<any>>
    %58 = tpu.memref_slice %arg2[%c6_i32_55] : memref<8x!tpu.dma_semaphore, #tpu.memory_space<semaphore_mem>> -> memref<1x!tpu.dma_semaphore, #tpu.memory_space<semaphore_mem>>
    %59 = tpu.memref_squeeze %58 : memref<1x!tpu.dma_semaphore, #tpu.memory_space<semaphore_mem>> -> memref<!tpu.dma_semaphore, #tpu.memory_space<semaphore_mem>>
    tpu.wait_dma2 semaphore(%59 : memref<!tpu.dma_semaphore, #tpu.memory_space<semaphore_mem>>) src(%56 : memref<256x128xf32, #tpu.memory_space<any>>) dst(%57 : memref<256x128xf32, #tpu.memory_space<any>>)
    %c7_i32_60 = arith.constant 7 : i32
    %c1792_i32_61 = arith.constant 1792 : i32
    %c0_i32_62 = arith.constant 0 : i32
    %60 = tpu.memref_slice %arg0[%c1792_i32_61, %c0_i32_62] : memref<2048x128xf32, #tpu.memory_space<any>> -> memref<256x128xf32, #tpu.memory_space<any>>
    %c1792_i32_63 = arith.constant 1792 : i32
    %c0_i32_64 = arith.constant 0 : i32
    %61 = tpu.memref_slice %arg1[%c1792_i32_63, %c0_i32_64] : memref<2048x128xf32, #tpu.memory_space<any>> -> memref<256x128xf32, #tpu.memory_space<any>>
    %62 = tpu.memref_slice %arg2[%c7_i32_60] : memref<8x!tpu.dma_semaphore, #tpu.memory_space<semaphore_mem>> -> memref<1x!tpu.dma_semaphore, #tpu.memory_space<semaphore_mem>>
    %63 = tpu.memref_squeeze %62 : memref<1x!tpu.dma_semaphore, #tpu.memory_space<semaphore_mem>> -> memref<!tpu.dma_semaphore, #tpu.memory_space<semaphore_mem>>
    tpu.wait_dma2 semaphore(%63 : memref<!tpu.dma_semaphore, #tpu.memory_space<semaphore_mem>>) src(%60 : memref<256x128xf32, #tpu.memory_space<any>>) dst(%61 : memref<256x128xf32, #tpu.memory_space<any>>)
    return
  }
}

</mosaic_0001>

<llo_original>
// kernel: tpu_custom_call.1
$region0: #{tpu_custom_call.1}
  #allocation0 [shape = 'u32[]', space=smem, size = 0x4, offset = 0x4, fixed_abs, tag = 'smem constant byte address 0x4 - core index']
  #allocation1 [shape = 'u32[72,128]{1,0:T(1,128)}', space=vmem, size = 0x9000, scoped, tag = 'internal scratch']
  #allocation2 [shape = 's32[8]{0}', space=sflag, size = 0x20, scoped, tag = 'scratch operand']
  #allocation3 [shape = 's32[]', space=sflag, size = 0x4, offset = 0, fixed_abs, tag = 'sflag constant byte address 0x0 - dummy sync flag']
  #allocation4 [shape = 'u32[0]{0}', space=smem, size = 0, offset = 0, fixed_abs, tag = 'smem constant byte address 0x0 - null']
  #allocation5 [shape = 's32[]', space=sflag, size = 0x4, offset = 0, fixed_abs, tag = 'sflag constant byte address 0x0 - dummy sync flag']
  #allocation6 [shape = 'u32[0]{0}', space=smem, size = 0, offset = 0, fixed_abs, tag = 'smem constant byte address 0x0 - null']
  #allocation7 [shape = 's32[]', space=sflag, size = 0x4, offset = 0, fixed_abs, tag = 'sflag constant byte address 0x0 - dummy sync flag']
  #allocation8 [shape = 'u32[0]{0}', space=smem, size = 0, offset = 0, fixed_abs, tag = 'smem constant byte address 0x0 - null']
  #allocation9 [shape = 's32[]', space=sflag, size = 0x4, offset = 0, fixed_abs, tag = 'sflag constant byte address 0x0 - dummy sync flag']
  #allocation10 [shape = 'u32[0]{0}', space=smem, size = 0, offset = 0, fixed_abs, tag = 'smem constant byte address 0x0 - null']
  #allocation11 [shape = 's32[]', space=sflag, size = 0x4, offset = 0, fixed_abs, tag = 'sflag constant byte address 0x0 - dummy sync flag']
  #allocation12 [shape = 'u32[0]{0}', space=smem, size = 0, offset = 0, fixed_abs, tag = 'smem constant byte address 0x0 - null']
  #allocation13 [shape = 's32[]', space=sflag, size = 0x4, offset = 0, fixed_abs, tag = 'sflag constant byte address 0x0 - dummy sync flag']
  #allocation14 [shape = 'u32[0]{0}', space=smem, size = 0, offset = 0, fixed_abs, tag = 'smem constant byte address 0x0 - null']
  #allocation15 [shape = 's32[]', space=sflag, size = 0x4, offset = 0, fixed_abs, tag = 'sflag constant byte address 0x0 - dummy sync flag']
  #allocation16 [shape = 'u32[0]{0}', space=smem, size = 0, offset = 0, fixed_abs, tag = 'smem constant byte address 0x0 - null']
  #allocation17 [shape = 's32[]', space=sflag, size = 0x4, offset = 0, fixed_abs, tag = 'sflag constant byte address 0x0 - dummy sync flag']
  #allocation18 [shape = 'u32[0]{0}', space=smem, size = 0, offset = 0, fixed_abs, tag = 'smem constant byte address 0x0 - null']
  %s0 = inlined_call_operand.hbm [shape: f32[2048,128], index: 0, kind: input, shape index: {}]
  %s1 = inlined_call_operand.hbm [shape: f32[2048,128], index: 1, kind: output, shape index: {}]
  %s2 = sld [smem:[#allocation0]]
  $region2: #{tpu_custom_call.1} parent=0
    _
  %s4 = ssub.s32 1, %s2
  %s5 = scalar_select 0, %s4, %s2
  %s7 = sshll.u32 1, 14
  %s8 = sxor.u32 4294967295, %s7
  %s10 = sshll.u32 %s0, 4
  %s11 = int_to_ptr.hbm [resolvable:$true] %s10
  %s12 = sshll.u32 %s1, 4
  %s13 = int_to_ptr.hbm [resolvable:$true] %s12
  %16 = dma.general %s11, 4096, %s13, [#allocation2], [#allocation3], [#allocation4], 0, 0
  %s17 = scalar_lea.hbm %s0, 256
  %s18 = scalar_lea.hbm %s1, 256
  %s19 = scalar_lea.sflag [#allocation2], 1
  %s21 = sshll.u32 1, 14
  %s22 = sxor.u32 4294967295, %s21
  %s24 = sshll.u32 %s17, 4
  %s25 = int_to_ptr.hbm [resolvable:$true] %s24
  %s26 = sshll.u32 %s18, 4
  %s27 = int_to_ptr.hbm [resolvable:$true] %s26
  %30 = dma.general %s25, 4096, %s27, %s19, [#allocation5], [#allocation6], 0, 0
  %s31 = scalar_lea.hbm %s0, 512
  %s32 = scalar_lea.hbm %s1, 512
  %s33 = scalar_lea.sflag [#allocation2], 2
  %s35 = sshll.u32 1, 14
  %s36 = sxor.u32 4294967295, %s35
  %s38 = sshll.u32 %s31, 4
  %s39 = int_to_ptr.hbm [resolvable:$true] %s38
  %s40 = sshll.u32 %s32, 4
  %s41 = int_to_ptr.hbm [resolvable:$true] %s40
  %44 = dma.general %s39, 4096, %s41, %s33, [#allocation7], [#allocation8], 0, 0
  %s45 = scalar_lea.hbm %s0, 768
  %s46 = scalar_lea.hbm %s1, 768
  %s47 = scalar_lea.sflag [#allocation2], 3
  %s49 = sshll.u32 1, 14
  %s50 = sxor.u32 4294967295, %s49
  %s52 = sshll.u32 %s45, 4
  %s53 = int_to_ptr.hbm [resolvable:$true] %s52
  %s54 = sshll.u32 %s46, 4
  %s55 = int_to_ptr.hbm [resolvable:$true] %s54
  %58 = dma.general %s53, 4096, %s55, %s47, [#allocation9], [#allocation10], 0, 0
  %s59 = scalar_lea.hbm %s0, 1024
  %s60 = scalar_lea.hbm %s1, 1024
  %s61 = scalar_lea.sflag [#allocation2], 4
  %s63 = sshll.u32 1, 14
  %s64 = sxor.u32 4294967295, %s63
  %s66 = sshll.u32 %s59, 4
  %s67 = int_to_ptr.hbm [resolvable:$true] %s66
  %s68 = sshll.u32 %s60, 4
  %s69 = int_to_ptr.hbm [resolvable:$true] %s68
  %72 = dma.general %s67, 4096, %s69, %s61, [#allocation11], [#allocation12], 0, 0
  %s73 = scalar_lea.hbm %s0, 1280
  %s74 = scalar_lea.hbm %s1, 1280
  %s75 = scalar_lea.sflag [#allocation2], 5
  %s77 = sshll.u32 1, 14
  %s78 = sxor.u32 4294967295, %s77
  %s80 = sshll.u32 %s73, 4
  %s81 = int_to_ptr.hbm [resolvable:$true] %s80
  %s82 = sshll.u32 %s74, 4
  %s83 = int_to_ptr.hbm [resolvable:$true] %s82
  %86 = dma.general %s81, 4096, %s83, %s75, [#allocation13], [#allocation14], 0, 0
  %s87 = scalar_lea.hbm %s0, 1536
  %s88 = scalar_lea.hbm %s1, 1536
  %s89 = scalar_lea.sflag [#allocation2], 6
  %s91 = sshll.u32 1, 14
  %s92 = sxor.u32 4294967295, %s91
  %s94 = sshll.u32 %s87, 4
  %s95 = int_to_ptr.hbm [resolvable:$true] %s94
  %s96 = sshll.u32 %s88, 4
  %s97 = int_to_ptr.hbm [resolvable:$true] %s96
  %100 = dma.general %s95, 4096, %s97, %s89, [#allocation15], [#allocation16], 0, 0
  %s101 = scalar_lea.hbm %s0, 1792
  %s102 = scalar_lea.hbm %s1, 1792
  %s103 = scalar_lea.sflag [#allocation2], 7
  %s105 = sshll.u32 1, 14
  %s106 = sxor.u32 4294967295, %s105
  %s108 = sshll.u32 %s101, 4
  %s109 = int_to_ptr.hbm [resolvable:$true] %s108
  %s110 = sshll.u32 %s102, 4
  %s111 = int_to_ptr.hbm [resolvable:$true] %s110
  %114 = dma.general %s109, 4096, %s111, %s103, [#allocation17], [#allocation18], 0, 0
  %s115 = smul.u32 256, 1
  %s116 = sshll.u32 %s115, 4
  %117 = dma.done [#allocation2], %s116
  %s118 = sshll.u32 %s115, 4
  %119 = dma.done %s19, %s118
  %s120 = sshll.u32 %s115, 4
  %121 = dma.done %s33, %s120
  %s122 = sshll.u32 %s115, 4
  %123 = dma.done %s47, %s122
  %s124 = sshll.u32 %s115, 4
  %125 = dma.done %s61, %s124
  %s126 = sshll.u32 %s115, 4
  %127 = dma.done %s75, %s126
  %s128 = sshll.u32 %s115, 4
  %129 = dma.done %s89, %s128
  %s130 = sshll.u32 %s115, 4
  %131 = dma.done %s103, %s130
  %132 = vsyncmov [#allocation2]
  %s133 = vpop.sfrf %132
  %p134 = scmp.eq.s32.totalorder %s133, 0
  %p135 = pneg %p134
  %137 = shalt.err (%p135)
  %s138 = scalar_lea.sflag [#allocation2], 1
  %139 = vsyncmov %s138
  %s140 = vpop.sfrf %139
  %p141 = scmp.eq.s32.totalorder %s140, 0
  %p142 = pneg %p141
  %144 = shalt.err (%p142)
  %s145 = scalar_lea.sflag [#allocation2], 2
  %146 = vsyncmov %s145
  %s147 = vpop.sfrf %146
  %p148 = scmp.eq.s32.totalorder %s147, 0
  %p149 = pneg %p148
  %151 = shalt.err (%p149)
  %s152 = scalar_lea.sflag [#allocation2], 3
  %153 = vsyncmov %s152
  %s154 = vpop.sfrf %153
  %p155 = scmp.eq.s32.totalorder %s154, 0
  %p156 = pneg %p155
  %158 = shalt.err (%p156)
  %s159 = scalar_lea.sflag [#allocation2], 4
  %160 = vsyncmov %s159
  %s161 = vpop.sfrf %160
  %p162 = scmp.eq.s32.totalorder %s161, 0
  %p163 = pneg %p162
  %165 = shalt.err (%p163)
  %s166 = scalar_lea.sflag [#allocation2], 5
  %167 = vsyncmov %s166
  %s168 = vpop.sfrf %167
  %p169 = scmp.eq.s32.totalorder %s168, 0
  %p170 = pneg %p169
  %172 = shalt.err (%p170)
  %s173 = scalar_lea.sflag [#allocation2], 6
  %174 = vsyncmov %s173
  %s175 = vpop.sfrf %174
  %p176 = scmp.eq.s32.totalorder %s175, 0
  %p177 = pneg %p176
  %179 = shalt.err (%p177)
  %s180 = scalar_lea.sflag [#allocation2], 7
  %181 = vsyncmov %s180
  %s182 = vpop.sfrf %181
  %p183 = scmp.eq.s32.totalorder %s182, 0
  %p184 = pneg %p183
  %186 = shalt.err (%p184)

</llo_original>
